<compile_context>
chip_gen: v7x
topology: tpu7x:2x2x1
jax: 0.10.0
libtpu: 0.0.40
codegen_flags: <defaults>
</compile_context>

<pallas_src>
import jax
import jax.numpy as jnp
from jax.experimental import pallas as pl
from jax.experimental.pallas import tpu as pltpu


def _round_up(x, m):
    return (x + m - 1) // m * m


# ---------------------------------------------------------------------------
# Kernel 1: feature extraction stand-in (flatten + linear)  (B,F)@(F,D)->(B,D)
# Tiled matmul: grid=(B/tm, D/tn, F/tk), bf16 operands, f32 VMEM accumulator.
# ---------------------------------------------------------------------------
def _feature_matmul_kernel(x_ref, w_ref, z_ref, acc_ref):
    @pl.when(pl.program_id(2) == 0)
    def _():
        acc_ref[...] = jnp.zeros_like(acc_ref)

    acc_ref[...] += jnp.dot(x_ref[...], w_ref[...],
                            preferred_element_type=jnp.float32)

    @pl.when(pl.program_id(2) == pl.num_programs(2) - 1)
    def _():
        z_ref[...] = acc_ref[...]


def feature(x_flat, w_feat, *, tk=512):
    B, F = x_flat.shape
    D = w_feat.shape[1]

    Bp = _round_up(B, 8)
    if Bp > 128:
        Bp = _round_up(Bp, 128)
        tm = 128
    else:
        tm = Bp
    if D <= 128:
        tn, Dp = D, D
    else:
        tn, Dp = 128, _round_up(D, 128)
    tk_eff = min(tk, _round_up(F, 128))
    Fp = _round_up(F, tk_eff)

    xp = jnp.zeros((Bp, Fp), jnp.bfloat16).at[:B, :F].set(
        x_flat.astype(jnp.bfloat16))
    wp = jnp.zeros((Fp, Dp), jnp.bfloat16).at[:F, :D].set(
        w_feat.astype(jnp.bfloat16))

    out = pl.pallas_call(
        _feature_matmul_kernel,
        out_shape=jax.ShapeDtypeStruct((Bp, Dp), jnp.float32),
        grid_spec=pltpu.PrefetchScalarGridSpec(
            num_scalar_prefetch=0,
            grid=(Bp // tm, Dp // tn, Fp // tk_eff),
            in_specs=[pl.BlockSpec((tm, tk_eff), lambda i, j, k: (i, k)),
                      pl.BlockSpec((tk_eff, tn), lambda i, j, k: (k, j))],
            out_specs=pl.BlockSpec((tm, tn), lambda i, j, k: (i, j)),
            scratch_shapes=[pltpu.VMEM((tm, tn), jnp.float32)]),
        compiler_params=pltpu.CompilerParams(
            dimension_semantics=("parallel", "parallel", "arbitrary"),
            vmem_limit_bytes=32 * 1024 * 1024),
    )(xp, wp)
    return out[:B, :D]


# ---------------------------------------------------------------------------
# Kernel 2: blocked Mahalanobis width-ball voting (the hot path).
# Grid = (batch tiles [parallel], manifold tiles [arbitrary]).  Per step:
#   zmz   = (TB, D^2) @ (D^2, TM)   bf16 MXU matmul (the big Ms stream)
#   cross = (TB, D)   @ (D, TM)     f32 matmul (precomputed M_m @ mu_m columns)
#   d2    = zmz - 2*cross + mu'Mmu
#   close = d2 <= width_max^2
#   num  += (TB, TM) @ (TM, Lpad)   one-hot vote matmul (lane-dense output)
#   den  += row-sum(close)
# Output tile is resident across the manifold axis and written on the last step.
# ---------------------------------------------------------------------------
def _make_mah_vote_kernel(inv_n_labels):
    def kernel(w2_ref, zs_ref, z2_ref, mcols_ref, vt_ref, c_ref, oh_ref,
               phs_ref, num_sc, den_sc):
        mi = pl.program_id(1)

        @pl.when(mi == 0)
        def _():
            num_sc[...] = jnp.zeros_like(num_sc)
            den_sc[...] = jnp.zeros_like(den_sc)

        # z M_m z^T for TM manifolds at once (bf16 operands, f32 accumulation).
        zmz = jnp.dot(z2_ref[...], mcols_ref[...],
                      preferred_element_type=jnp.float32)          # (TB, TM)
        # z . (M_m mu_m)
        cross = jnp.dot(zs_ref[...], vt_ref[...],
                        preferred_element_type=jnp.float32)         # (TB, TM)
        d2 = zmz - 2.0 * cross + c_ref[...]                         # (TB, TM)
        close = (d2 <= w2_ref[0]).astype(jnp.float32)               # (TB, TM)

        num_sc[...] += jnp.dot(close, oh_ref[...],
                               preferred_element_type=jnp.float32)  # (TB, Lp)
        den_sc[...] += jnp.sum(close, axis=-1, keepdims=True)       # (TB, 1)

        @pl.when(mi == pl.num_programs(1) - 1)
        def _():
            den = den_sc[...]
            phs_ref[...] = jnp.where(den > 0.0,
                                     num_sc[...] / den,
                                     jnp.float32(inv_n_labels))
    return kernel


def mah_calibrator_probs(zs, mus, Ms, ys, width_max, n_labels,
                         *, ms_tile_bytes=4 << 20):
    B, D = zs.shape
    M = mus.shape[0]
    L = int(n_labels)

    zs = zs.astype(jnp.float32)
    mus = mus.astype(jnp.float32)
    Ms = Ms.astype(jnp.float32)

    # --- batch / label padding (sublane & lane density) ---
    Bp = _round_up(B, 8)
    if Bp > 128:
        Bp = _round_up(Bp, 128)
        TB = 128
    else:
        TB = Bp
    Lp = _round_up(max(L, 128), 128)

    # --- manifold tile: largest bf16 Ms tile under the VMEM budget ---
    per_manifold = D * D * 2                      # bf16 bytes
    fit = max(1, ms_tile_bytes // per_manifold)
    if fit >= M:
        TM = M                                    # single tile (full lane extent)
    else:
        TM = max(128, (fit // 128) * 128)         # tiled: lane dim must be 128-multiple
    Mp = _round_up(M, TM)

    # --- precomputed operands ---
    zsp = jnp.zeros((Bp, D), jnp.float32).at[:B].set(zs)
    z2 = (zsp[:, :, None] * zsp[:, None, :]).reshape(Bp, D * D).astype(jnp.bfloat16)
    mcols = jnp.zeros((D * D, Mp), jnp.bfloat16).at[:, :M].set(
        Ms.reshape(M, D * D).T.astype(jnp.bfloat16))            # column m = flat(M_m)
    V = jnp.einsum('mde,me->md', Ms, mus)                        # M_m @ mu_m
    vt = jnp.zeros((D, Mp), jnp.float32).at[:, :M].set(V.T)
    c = jnp.einsum('md,md->m', mus, V)                           # mu_m' M_m mu_m
    c_row = jnp.full((1, Mp), 1e30, jnp.float32).at[0, :M].set(c)  # pad => never close
    oh = jnp.zeros((Mp, Lp), jnp.float32).at[:M, :L].set(
        jax.nn.one_hot(ys, L, dtype=jnp.float32))
    w2 = jnp.asarray([width_max], dtype=jnp.float32) ** 2        # squared threshold

    kernel = _make_mah_vote_kernel(1.0 / float(L))
    grid_spec = pltpu.PrefetchScalarGridSpec(
        num_scalar_prefetch=0,
        grid=(Bp // TB, Mp // TM),
        in_specs=[
            pl.BlockSpec(memory_space=pltpu.MemorySpace.SMEM),       # width_max^2
            pl.BlockSpec((TB, D), lambda bi, mi: (bi, 0)),           # zs
            pl.BlockSpec((TB, D * D), lambda bi, mi: (bi, 0)),       # z (x) z, flattened
            pl.BlockSpec((D * D, TM), lambda bi, mi: (0, mi)),       # Ms columns (bf16)
            pl.BlockSpec((D, TM), lambda bi, mi: (0, mi)),           # M_m mu_m
            pl.BlockSpec((1, TM), lambda bi, mi: (0, mi)),           # mu' M mu
            pl.BlockSpec((TM, Lp), lambda bi, mi: (mi, 0)),          # one-hot labels
        ],
        out_specs=pl.BlockSpec((TB, Lp), lambda bi, mi: (bi, 0)),
        scratch_shapes=[pltpu.VMEM((TB, Lp), jnp.float32),
                        pltpu.VMEM((TB, 1), jnp.float32)],
    )
    phs_p = pl.pallas_call(
        kernel,
        out_shape=jax.ShapeDtypeStruct((Bp, Lp), jnp.float32),
        grid_spec=grid_spec,
        compiler_params=pltpu.CompilerParams(
            dimension_semantics=("parallel", "arbitrary"),
            vmem_limit_bytes=32 * 1024 * 1024),
    )(w2, zsp, z2, mcols, vt, c_row, oh)
    return phs_p[:B, :L]


if __name__ == "__main__":
    B, C, H, W = 2, 4, 16, 16       # batch, channels, spatial
    D = 32                          # feature dim of model.feature
    L = 4                           # n_labels (width of model(xs) logits)
    M = 8                           # total number of learned manifolds

    key = jax.random.PRNGKey(0)
    k_x, k_w, k_mu, k_A, k_y = jax.random.split(key, 5)

    xs = jax.random.normal(k_x, (B, C, H, W), dtype=jnp.float32)
    w_feat = jax.random.normal(k_w, (C * H * W, D), dtype=jnp.float32) * 0.05
    mus = jax.random.normal(k_mu, (M, D), dtype=jnp.float32)
    A = jax.random.normal(k_A, (M, D, D), dtype=jnp.float32)
    Ms = jnp.einsum('mij,mkj->mik', A, A) / D + 0.1 * jnp.eye(D)[None]  # SPD
    ys = jax.random.randint(k_y, (M,), 0, L)

    # --- external-model glue: zs = model.feature(xs) (tiled Pallas matmul) ---
    x_flat = xs.reshape(B, -1)
    zs = feature(x_flat, w_feat)                       # (B, D)

    # width_max: deterministic threshold placed at the largest interior gap of the
    # f32 distance spectrum (stand-in for the line-searched width); the wide margin
    # keeps the bf16 in-kernel distances on the same side of the threshold.
    zbar_ref = zs[None, :, :] - mus[:, None, :]
    d2_ref = jnp.einsum('mbd,mde,mbe->mb', zbar_ref, Ms, zbar_ref).T     # (B, M)
    d2_sorted = jnp.sort(d2_ref.reshape(-1))
    gaps = d2_sorted[1:] - d2_sorted[:-1]
    j = int(jnp.argmax(gaps[1:-1])) + 1
    width_max = float(jnp.sqrt(0.5 * (d2_sorted[j] + d2_sorted[j + 1])))

    phs = mah_calibrator_probs(zs, mus, Ms, ys, width_max, L)
    phs = jax.block_until_ready(phs)

    # pure-JAX reference of the forward pass
    ds_ref = jnp.sqrt(d2_ref)
    I_close = (ds_ref <= width_max).astype(jnp.float32)
    num = I_close @ jax.nn.one_hot(ys, L, dtype=jnp.float32)
    den = I_close.sum(1, keepdims=True)
    phs_ref = jnp.where(den > 0, num / den, 1.0 / L)

    assert phs.shape == (B, L)
    assert jnp.allclose(phs, phs_ref, atol=1e-5, rtol=1e-5), (phs, phs_ref)
    print("KERNEL_OK")
</pallas_src>

<mosaic_0001>
module attributes {stable_mosaic.version = 11 : i64} {
  func.func @_feature_matmul_kernel(%arg0: i32, %arg1: i32, %arg2: i32, %arg3: memref<8x512xbf16, #tpu.memory_space<vmem>>, %arg4: memref<512x32xbf16, #tpu.memory_space<vmem>>, %arg5: memref<8x32xf32, #tpu.memory_space<vmem>>, %arg6: memref<8x32xf32, #tpu.memory_space<vmem>>) attributes {dimension_semantics = [#tpu.dimension_semantics<parallel>, #tpu.dimension_semantics<parallel>, #tpu.dimension_semantics<arbitrary>], iteration_bounds = array<i64: 1, 1, 2>, scalar_prefetch = 0 : i64, scratch_operands = 1 : i64, tpu.core_type = #tpu.core_type<tc>, window_params = [{transform_indices = @transform_0, window_bounds = array<i64: 8, 512>}, {transform_indices = @transform_1, window_bounds = array<i64: 512, 32>}, {transform_indices = @transform_2, window_bounds = array<i64: 8, 32>}]} {
    %c0_i32 = arith.constant 0 : i32
    %0 = arith.cmpi eq, %arg2, %c0_i32 : i32
    %1 = arith.extui %0 : i1 to i32
    %c0_i32_0 = arith.constant 0 : i32
    %2 = arith.cmpi ne, %1, %c0_i32_0 : i32
    scf.if %2 {
      %cst_9 = arith.constant 0.000000e+00 : f32
      %12 = vector.broadcast %cst_9 : f32 to vector<8x32xf32>
      %c0_10 = arith.constant 0 : index
      %c0_11 = arith.constant 0 : index
      %13 = vector.load %arg6[%c0_10, %c0_11] : memref<8x32xf32, #tpu.memory_space<vmem>>, vector<8x32xf32>
      tpu.vector_store %arg6[%c0_10, %c0_11], %12 {strides = array<i32>} : memref<8x32xf32, #tpu.memory_space<vmem>>, vector<8x32xf32>,
    } else {
    }
    %c0 = arith.constant 0 : index
    %c0_1 = arith.constant 0 : index
    %3 = vector.load %arg6[%c0, %c0_1] : memref<8x32xf32, #tpu.memory_space<vmem>>, vector<8x32xf32>
    %c0_2 = arith.constant 0 : index
    %c0_3 = arith.constant 0 : index
    %4 = vector.load %arg3[%c0_2, %c0_3] : memref<8x512xbf16, #tpu.memory_space<vmem>>, vector<8x512xbf16>
    %c0_4 = arith.constant 0 : index
    %c0_5 = arith.constant 0 : index
    %5 = vector.load %arg4[%c0_4, %c0_5] : memref<512x32xbf16, #tpu.memory_space<vmem>>, vector<512x32xbf16>
    %cst = arith.constant dense<0.000000e+00> : vector<8x32xf32>
    %6 = tpu.matmul %4, %5, %cst {dimension_numbers = #tpu.dot_dimension_numbers<[1], [0], [0], [1], [0, 0, 1, 1], [], []>} : vector<8x512xbf16>, vector<512x32xbf16>, vector<8x32xf32> -> vector<8x32xf32>
    %7 = arith.addf %3, %6 : vector<8x32xf32>
    %c0_6 = arith.constant 0 : index
    %c0_7 = arith.constant 0 : index
    %8 = vector.load %arg6[%c0_6, %c0_7] : memref<8x32xf32, #tpu.memory_space<vmem>>, vector<8x32xf32>
    tpu.vector_store %arg6[%c0_6, %c0_7], %7 {strides = array<i32>} : memref<8x32xf32, #tpu.memory_space<vmem>>, vector<8x32xf32>,
    %c1_i32 = arith.constant 1 : i32
    %9 = arith.cmpi eq, %arg2, %c1_i32 : i32
    %10 = arith.extui %9 : i1 to i32
    %c0_i32_8 = arith.constant 0 : i32
    %11 = arith.cmpi ne, %10, %c0_i32_8 : i32
    scf.if %11 {
      %c0_9 = arith.constant 0 : index
      %c0_10 = arith.constant 0 : index
      %12 = vector.load %arg6[%c0_9, %c0_10] : memref<8x32xf32, #tpu.memory_space<vmem>>, vector<8x32xf32>
      %c0_11 = arith.constant 0 : index
      %c0_12 = arith.constant 0 : index
      %13 = vector.load %arg5[%c0_11, %c0_12] : memref<8x32xf32, #tpu.memory_space<vmem>>, vector<8x32xf32>
      tpu.vector_store %arg5[%c0_11, %c0_12], %12 {strides = array<i32>} : memref<8x32xf32, #tpu.memory_space<vmem>>, vector<8x32xf32>,
    } else {
    }
    return
  }
  func.func @transform_0(%arg0: i32, %arg1: i32, %arg2: i32) -> (i32, i32) {
    %c0_i32 = arith.constant 0 : i32
    return %arg0, %arg2 : i32, i32
  }
  func.func @transform_1(%arg0: i32, %arg1: i32, %arg2: i32) -> (i32, i32) {
    %c0_i32 = arith.constant 0 : i32
    return %arg2, %arg1 : i32, i32
  }
  func.func @transform_2(%arg0: i32, %arg1: i32, %arg2: i32) -> (i32, i32) {
    %c0_i32 = arith.constant 0 : i32
    return %arg0, %arg1 : i32, i32
  }
}

</mosaic_0001>

<llo_original>
// kernel: tpu_custom_call.1
$region0: #{tpu_custom_call.1}
  #allocation0 [shape = 'u32[]', space=smem, size = 0x4, offset = 0x4, fixed_abs, tag = 'smem constant byte address 0x4 - core index']
  #allocation1 [shape = 'u32[144,128]{1,0:T(1,128)}', space=vmem, size = 0x12000, scoped, tag = 'internal scratch']
  #allocation2 [shape = 'f32[8,32]{1,0:T(8,128)}', space=vmem, size = 0x1000, scoped, tag = 'scratch operand']
  %s0 = inlined_call_operand.vmem [shape: bf16[8,1024], index: 0, kind: input, shape index: {}]
  %s1 = inlined_call_operand.vmem [shape: bf16[1024,32], index: 1, kind: input, shape index: {}]
  %s2 = inlined_call_operand.hbm [shape: f32[8,32], index: 2, kind: output, shape index: {}]
  %s3 = sld [smem:[#allocation0]]
  $region49: #{tpu_custom_call.1} parent=0
    _
  %s5 = ssub.s32 1, %s3
  %s6 = scalar_select 0, %s5, %s3
  $region1: #{tpu_custom_call.1} parent=0
    #allocation3 [shape = 'u8[4096]{0}', space=vmem, size = 0x1000, scoped, tag = 'output window, operand 0, single buffered']
    #allocation4 [shape = 's32[2]{0}', space=sflag, size = 0x8, scoped, tag = 'scoped memory for tpu_custom_call.1']
    %7 = vsyncpa [#allocation4], 0
    loop: start=0, step=1, limit=4
    $region2: #{tpu_custom_call.1} parent=1 // loop_pre_header
      _
    $region3: #{tpu_custom_call.1} parent=1 // loop_header
      %s9 = sphi 0, %s13
      %p10 = scmp.ge.s32.totalorder %s9, 4
      %s16 = sphi 0, %s35
      %s17 = sphi 0, %s31
      %s18 = sphi 0, %s27
      %s19 = sphi 0, %s16
      %s20 = sphi 0, %s17
      %s21 = sphi 0, %s18
      %s22 = sphi 0, %s19
      %s23 = sphi 0, %s20
      %s24 = sphi 0, %s21
      %s40 = sphi 0, %s42
      %s43 = sphi 0, %s40
      %s44 = sphi 0, %s43
      %s60 = sphi 0, %s44
      %s68 = sphi 0, %s70
      %s71 = sphi 0, %s68
      %s72 = sphi 0, %s71
      %s88 = sphi 0, %s72
      %s96 = sphi 0, %s98
      %s99 = sphi 0, %s96
      %s100 = sphi 0, %s99
      %s116 = sphi 0, %s100
    $region4: #{tpu_custom_call.1} parent=1 // loop_header_branch
      %12 = sbr.rel (%p10) target = $region8
    $region5: #{tpu_custom_call.1} parent=1 // loop_body
      %s14 = ssub.s32 %s9, 1
      %s15 = ssub.s32 %s9, 2
      %s25 = sadd.s32 1, %s18
      %p26 = scmp.ge.s32.totalorder %s25, 2
      %s27 = scalar_select %p26, 0, %s25
      %s28 = sadd.s32 1, %s17
      %s29 = scalar_select %p26, %s28, %s17
      %p30 = scmp.ge.s32.totalorder %s29, 1
      %s31 = scalar_select %p30, 0, %s29
      %s32 = sadd.s32 1, %s16
      %s33 = scalar_select %p30, %s32, %s16
      %p34 = scmp.ge.s32.totalorder %s33, 1
      %s35 = scalar_select %p34, 0, %s33
      %s36 = ssub.s32 %s16, %s35
      %s37 = ssub.s32 %s18, %s27
      %s38 = sor.u32 %s36, %s37
      %p39 = scmp.eq.s32.totalorder %s38, 0
      %s41 = sadd.s32 %s40, 1
      %s42 = scalar_select %p39, %s40, %s41
      %p45 = pneg %p39
      %p46 = scmp.eq.s32.totalorder %s9, 1
      %p47 = por %p45, %p46
      %p48 = scmp.ne.s32.totalorder %s40, %s43
      %p49 = scmp.eq.s32.totalorder %s9, 0
      %p50 = por %p48, %p49
      %p51 = scmp.ne.s32.totalorder %s40, %s43
      %p52 = scmp.eq.s32.totalorder %s14, 1
      %p53 = por %p51, %p52
      %p54 = scmp.ne.s32.totalorder %s43, %s44
      %p55 = scmp.eq.s32.totalorder %s14, 0
      %p56 = por %p54, %p55
      %p57 = scmp.ne.s32.totalorder %s43, %s44
      %p58 = scmp.eq.s32.totalorder %s15, 1
      %p59 = por %p57, %p58
      %p61 = scmp.ne.s32.totalorder %s44, %s60
      %p62 = scmp.eq.s32.totalorder %s15, 0
      %p63 = por %p61, %p62
      %s64 = ssub.s32 %s18, %s27
      %s65 = ssub.s32 %s17, %s31
      %s66 = sor.u32 %s64, %s65
      %p67 = scmp.eq.s32.totalorder %s66, 0
      %s69 = sadd.s32 %s68, 1
      %s70 = scalar_select %p67, %s68, %s69
      %p73 = pneg %p67
      %p74 = scmp.eq.s32.totalorder %s9, 1
      %p75 = por %p73, %p74
      %p76 = scmp.ne.s32.totalorder %s68, %s71
      %p77 = scmp.eq.s32.totalorder %s9, 0
      %p78 = por %p76, %p77
      %p79 = scmp.ne.s32.totalorder %s68, %s71
      %p80 = scmp.eq.s32.totalorder %s14, 1
      %p81 = por %p79, %p80
      %p82 = scmp.ne.s32.totalorder %s71, %s72
      %p83 = scmp.eq.s32.totalorder %s14, 0
      %p84 = por %p82, %p83
      %p85 = scmp.ne.s32.totalorder %s71, %s72
      %p86 = scmp.eq.s32.totalorder %s15, 1
      %p87 = por %p85, %p86
      %p89 = scmp.ne.s32.totalorder %s72, %s88
      %p90 = scmp.eq.s32.totalorder %s15, 0
      %p91 = por %p89, %p90
      %s92 = ssub.s32 %s16, %s35
      %s93 = ssub.s32 %s17, %s31
      %s94 = sor.u32 %s92, %s93
      %p95 = scmp.eq.s32.totalorder %s94, 0
      %s97 = sadd.s32 %s96, 1
      %s98 = scalar_select %p95, %s96, %s97
      %p101 = pneg %p95
      %p102 = scmp.eq.s32.totalorder %s9, 1
      %p103 = por %p101, %p102
      %p104 = scmp.ne.s32.totalorder %s96, %s99
      %p105 = scmp.eq.s32.totalorder %s9, 0
      %p106 = por %p104, %p105
      %p107 = scmp.ne.s32.totalorder %s96, %s99
      %p108 = scmp.eq.s32.totalorder %s14, 1
      %p109 = por %p107, %p108
      %p110 = scmp.ne.s32.totalorder %s99, %s100
      %p111 = scmp.eq.s32.totalorder %s14, 0
      %p112 = por %p110, %p111
      %p113 = scmp.ne.s32.totalorder %s99, %s100
      %p114 = scmp.eq.s32.totalorder %s15, 1
      %p115 = por %p113, %p114
      %p117 = scmp.ne.s32.totalorder %s100, %s116
      %p118 = scmp.eq.s32.totalorder %s15, 0
      %p119 = por %p117, %p118
      %p120 = scmp.le.s32.totalorder 1, %s9
      %p121 = scmp.lt.s32.totalorder %s9, 3
      %p122 = pnand %p120, %p121
      %p123 = pneg %p122
      // Predicated region
      $region9: #{tpu_custom_call.1} parent=5 // pred_check
        _
      $region10: #{tpu_custom_call.1} parent=5 // pred_check_branch
        %125 = sbr.rel (%p122) target = $region12
      $region11: #{tpu_custom_call.1} parent=5 // pred_region
        %s126 = ssub.s32 %s9, 1
      $region12: #{tpu_custom_call.1} parent=5 // pred_fallthru
        _
      %p127 = scmp.lt.s32.totalorder %s9, 2
      // Predicated region
      $region13: #{tpu_custom_call.1} parent=5 // pred_check
        %p128 = pneg %p127
      $region14: #{tpu_custom_call.1} parent=5 // pred_check_branch
        %130 = sbr.rel (%p128) target = $region16
      $region15: #{tpu_custom_call.1} parent=5 // pred_region
        // Predicated region
        $region17: #{tpu_custom_call.1} parent=15 // pred_check
          %p131 = pneg %p50
        $region18: #{tpu_custom_call.1} parent=15 // pred_check_branch
          %133 = sbr.rel (%p131) target = $region20
        $region19: #{tpu_custom_call.1} parent=15 // pred_region
          %s134 = smul.u32 4, %s18
          %p135 = scmp.lt.s32.totalorder %s16, 0
          %s136 = scalar_select %p135, %s16, 0
          %p137 = scmp.lt.s32.totalorder %s134, 7
          %s138 = scalar_select %p137, %s134, 7
          %s139 = smul.addr %s136, 8
          %s140 = sadd.s32 %s138, %s139
          %s141 = smul.addr %s140, 4
          %s142 = scalar_lea.vmem %s0, %s141
          %s143 = smul.u32 4, %s18
        $region20: #{tpu_custom_call.1} parent=15 // pred_fallthru
          _
        // Predicated region
        $region21: #{tpu_custom_call.1} parent=15 // pred_check
          %p144 = pneg %p78
        $region22: #{tpu_custom_call.1} parent=15 // pred_check_branch
          %146 = sbr.rel (%p144) target = $region24
        $region23: #{tpu_custom_call.1} parent=15 // pred_region
          %s147 = smul.u32 64, %s18
          %p148 = scmp.lt.s32.totalorder %s147, 127
          %s149 = scalar_select %p148, %s147, 127
          %p150 = scmp.lt.s32.totalorder %s17, 0
          %s151 = scalar_select %p150, %s17, 0
          %s152 = sadd.s32 %s151, %s149
          %s153 = smul.addr %s152, 4
          %s154 = scalar_lea.vmem %s1, %s153
          %s155 = smul.u32 64, %s18
        $region24: #{tpu_custom_call.1} parent=15 // pred_fallthru
          _
      $region16: #{tpu_custom_call.1} parent=5 // pred_fallthru
        _
      %p156 = scmp.le.s32.totalorder 1, %s9
      %p157 = scmp.lt.s32.totalorder %s9, 3
      %p158 = pnand %p156, %p157
      %p159 = pneg %p158
      // Predicated region
      $region25: #{tpu_custom_call.1} parent=5 // pred_check
        _
      $region26: #{tpu_custom_call.1} parent=5 // pred_check_branch
        %161 = sbr.rel (%p158) target = $region28
      $region27: #{tpu_custom_call.1} parent=5 // pred_region
        %s162 = ssub.s32 %s9, 1
        %s163 = smul.u32 4, %s21
        %p164 = scmp.lt.s32.totalorder %s19, 0
        %s165 = scalar_select %p164, %s19, 0
        %p166 = scmp.lt.s32.totalorder %s163, 7
        %s167 = scalar_select %p166, %s163, 7
        %s168 = smul.addr %s165, 8
        %s169 = sadd.s32 %s167, %s168
        %s170 = smul.addr %s169, 4
        %s171 = scalar_lea.vmem %s0, %s170
        %p172 = pneg %p56
        %p173 = pneg %p53
        %s174 = smul.u32 64, %s21
        %p175 = scmp.lt.s32.totalorder %s174, 127
        %s176 = scalar_select %p175, %s174, 127
        %p177 = scmp.lt.s32.totalorder %s20, 0
        %s178 = scalar_select %p177, %s20, 0
        %s179 = sadd.s32 %s178, %s176
        %s180 = smul.addr %s179, 4
        %s181 = scalar_lea.vmem %s1, %s180
        %p182 = pneg %p84
        %p183 = pneg %p81
        %p184 = pneg %p112
        %p185 = pneg %p109
        %s186 = smul.u32 4, %s21
        %p187 = scmp.lt.s32.totalorder %s19, 0
        %s188 = scalar_select %p187, %s19, 0
        %p189 = scmp.lt.s32.totalorder %s186, 7
        %s190 = scalar_select %p189, %s186, 7
        %s191 = smul.addr %s188, 8
        %s192 = sadd.s32 %s190, %s191
        %s193 = smul.addr %s192, 4
        %s194 = scalar_lea.vmem %s0, %s193
        %s195 = smul.u32 4, %s21
        %s196 = smul.u32 64, %s21
        %p197 = scmp.lt.s32.totalorder %s196, 127
        %s198 = scalar_select %p197, %s196, 127
        %p199 = scmp.lt.s32.totalorder %s20, 0
        %s200 = scalar_select %p199, %s20, 0
        %s201 = sadd.s32 %s200, %s198
        %s202 = smul.addr %s201, 4
        %s203 = scalar_lea.vmem %s1, %s202
        %s204 = smul.u32 64, %s21
        %p206 = scmp.eq.s32.totalorder %s21, 0
        // Predicated region
        $region29: #{tpu_custom_call.1} parent=27 // pred_check
          %p207 = pneg %p206
        $region30: #{tpu_custom_call.1} parent=27 // pred_check_branch
          %209 = sbr.rel (%p207) target = $region32
        $region31: #{tpu_custom_call.1} parent=27 // pred_region
          %vm210 = vcmask 261120
          %211 = vst.msk [vmem:[#allocation2] sm:$0xff] %vm210, 0.0
        $region32: #{tpu_custom_call.1} parent=27 // pred_fallthru
          _
        %v212 = vld [vmem:[#allocation2] sm:$0xff]
        %v213 = vld [vmem:[%s194] sm:$0xff]
        %v214 = vld [vmem:[%s194 + $0x8] sm:$0xff]
        %v215 = vld [vmem:[%s203] sm:$0xf]
        %v216 = vld [vmem:[%s203 + $0x4] sm:$0xf]
        %v217 = vld [vmem:[%s203 + $0x8] sm:$0xf]
        %v218 = vld [vmem:[%s203 + $0xc] sm:$0xf]
        %v219 = vld [vmem:[%s203 + $0x10] sm:$0xf]
        %v220 = vld [vmem:[%s203 + $0x14] sm:$0xf]
        %v221 = vld [vmem:[%s203 + $0x18] sm:$0xf]
        %v222 = vld [vmem:[%s203 + $0x1c] sm:$0xf]
        %v223 = vld [vmem:[%s203 + $0x20] sm:$0xf]
        %v224 = vld [vmem:[%s203 + $0x24] sm:$0xf]
        %v225 = vld [vmem:[%s203 + $0x28] sm:$0xf]
        %v226 = vld [vmem:[%s203 + $0x2c] sm:$0xf]
        %v227 = vld [vmem:[%s203 + $0x30] sm:$0xf]
        %v228 = vld [vmem:[%s203 + $0x34] sm:$0xf]
        %v229 = vld [vmem:[%s203 + $0x38] sm:$0xf]
        %v230 = vld [vmem:[%s203 + $0x3c] sm:$0xf]
        %v231 = vld [vmem:[%s203 + $0x40] sm:$0xf]
        %v232 = vld [vmem:[%s203 + $0x44] sm:$0xf]
        %v233 = vld [vmem:[%s203 + $0x48] sm:$0xf]
        %v234 = vld [vmem:[%s203 + $0x4c] sm:$0xf]
        %v235 = vld [vmem:[%s203 + $0x50] sm:$0xf]
        %v236 = vld [vmem:[%s203 + $0x54] sm:$0xf]
        %v237 = vld [vmem:[%s203 + $0x58] sm:$0xf]
        %v238 = vld [vmem:[%s203 + $0x5c] sm:$0xf]
        %v239 = vld [vmem:[%s203 + $0x60] sm:$0xf]
        %v240 = vld [vmem:[%s203 + $0x64] sm:$0xf]
        %v241 = vld [vmem:[%s203 + $0x68] sm:$0xf]
        %v242 = vld [vmem:[%s203 + $0x6c] sm:$0xf]
        %v243 = vld [vmem:[%s203 + $0x70] sm:$0xf]
        %v244 = vld [vmem:[%s203 + $0x74] sm:$0xf]
        %v245 = vld [vmem:[%s203 + $0x78] sm:$0xf]
        %v246 = vld [vmem:[%s203 + $0x7c] sm:$0xf]
        %v247 = vld [vmem:[%s203 + $0x80] sm:$0xf]
        %v248 = vld [vmem:[%s203 + $0x84] sm:$0xf]
        %v249 = vld [vmem:[%s203 + $0x88] sm:$0xf]
        %v250 = vld [vmem:[%s203 + $0x8c] sm:$0xf]
        %v251 = vld [vmem:[%s203 + $0x90] sm:$0xf]
        %v252 = vld [vmem:[%s203 + $0x94] sm:$0xf]
        %v253 = vld [vmem:[%s203 + $0x98] sm:$0xf]
        %v254 = vld [vmem:[%s203 + $0x9c] sm:$0xf]
        %v255 = vld [vmem:[%s203 + $0xa0] sm:$0xf]
        %v256 = vld [vmem:[%s203 + $0xa4] sm:$0xf]
        %v257 = vld [vmem:[%s203 + $0xa8] sm:$0xf]
        %v258 = vld [vmem:[%s203 + $0xac] sm:$0xf]
        %v259 = vld [vmem:[%s203 + $0xb0] sm:$0xf]
        %v260 = vld [vmem:[%s203 + $0xb4] sm:$0xf]
        %v261 = vld [vmem:[%s203 + $0xb8] sm:$0xf]
        %v262 = vld [vmem:[%s203 + $0xbc] sm:$0xf]
        %v263 = vld [vmem:[%s203 + $0xc0] sm:$0xf]
        %v264 = vld [vmem:[%s203 + $0xc4] sm:$0xf]
        %v265 = vld [vmem:[%s203 + $0xc8] sm:$0xf]
        %v266 = vld [vmem:[%s203 + $0xcc] sm:$0xf]
        %v267 = vld [vmem:[%s203 + $0xd0] sm:$0xf]
        %v268 = vld [vmem:[%s203 + $0xd4] sm:$0xf]
        %v269 = vld [vmem:[%s203 + $0xd8] sm:$0xf]
        %v270 = vld [vmem:[%s203 + $0xdc] sm:$0xf]
        %v271 = vld [vmem:[%s203 + $0xe0] sm:$0xf]
        %v272 = vld [vmem:[%s203 + $0xe4] sm:$0xf]
        %v273 = vld [vmem:[%s203 + $0xe8] sm:$0xf]
        %v274 = vld [vmem:[%s203 + $0xec] sm:$0xf]
        %v275 = vld [vmem:[%s203 + $0xf0] sm:$0xf]
        %v276 = vld [vmem:[%s203 + $0xf4] sm:$0xf]
        %v277 = vld [vmem:[%s203 + $0xf8] sm:$0xf]
        %v278 = vld [vmem:[%s203 + $0xfc] sm:$0xf]
        %v281 = vunpack.c.l.b16 %v213
        %v282 = vunpack.c.h.b16 %v213
        %v283 = vunpack.c.l.b16 %v214
        %v284 = vunpack.c.h.b16 %v214
        %v285 = vpack.c.b16 %v281, %v281
        %v286 = vpack.c.b16 %v282, %v282
        %v287 = vpack.c.b16 %v283, %v283
        %v288 = vpack.c.b16 %v284, %v284
        %v357 = vunpack.c.l.b16 %v215
        %v358 = vunpack.c.l.b16 %v216
        %v359 = vunpack.c.l.b16 %v217
        %v360 = vunpack.c.l.b16 %v218
        %v361 = vunpack.c.l.b16 %v219
        %v362 = vunpack.c.l.b16 %v220
        %v363 = vunpack.c.l.b16 %v221
        %v364 = vunpack.c.l.b16 %v222
        %v365 = vunpack.c.l.b16 %v223
        %v366 = vunpack.c.l.b16 %v224
        %v367 = vunpack.c.l.b16 %v225
        %v368 = vunpack.c.l.b16 %v226
        %v369 = vunpack.c.l.b16 %v227
        %v370 = vunpack.c.l.b16 %v228
        %v371 = vunpack.c.l.b16 %v229
        %v372 = vunpack.c.l.b16 %v230
        %v373 = vunpack.c.l.b16 %v231
        %v374 = vunpack.c.l.b16 %v232
        %v375 = vunpack.c.l.b16 %v233
        %v376 = vunpack.c.l.b16 %v234
        %v377 = vunpack.c.l.b16 %v235
        %v378 = vunpack.c.l.b16 %v236
        %v379 = vunpack.c.l.b16 %v237
        %v380 = vunpack.c.l.b16 %v238
        %v381 = vunpack.c.l.b16 %v239
        %v382 = vunpack.c.l.b16 %v240
        %v383 = vunpack.c.l.b16 %v241
        %v384 = vunpack.c.l.b16 %v242
        %v385 = vunpack.c.l.b16 %v243
        %v386 = vunpack.c.l.b16 %v244
        %v387 = vunpack.c.l.b16 %v245
        %v388 = vunpack.c.l.b16 %v246
        %v389 = vunpack.c.l.b16 %v247
        %v390 = vunpack.c.l.b16 %v248
        %v391 = vunpack.c.l.b16 %v249
        %v392 = vunpack.c.l.b16 %v250
        %v393 = vunpack.c.l.b16 %v251
        %v394 = vunpack.c.l.b16 %v252
        %v395 = vunpack.c.l.b16 %v253
        %v396 = vunpack.c.l.b16 %v254
        %v397 = vunpack.c.l.b16 %v255
        %v398 = vunpack.c.l.b16 %v256
        %v399 = vunpack.c.l.b16 %v257
        %v400 = vunpack.c.l.b16 %v258
        %v401 = vunpack.c.l.b16 %v259
        %v402 = vunpack.c.l.b16 %v260
        %v403 = vunpack.c.l.b16 %v261
        %v404 = vunpack.c.l.b16 %v262
        %v405 = vunpack.c.l.b16 %v263
        %v406 = vunpack.c.l.b16 %v264
        %v407 = vunpack.c.l.b16 %v265
        %v408 = vunpack.c.l.b16 %v266
        %v409 = vunpack.c.l.b16 %v267
        %v410 = vunpack.c.l.b16 %v268
        %v411 = vunpack.c.l.b16 %v269
        %v412 = vunpack.c.l.b16 %v270
        %v413 = vunpack.c.l.b16 %v271
        %v414 = vunpack.c.l.b16 %v272
        %v415 = vunpack.c.l.b16 %v273
        %v416 = vunpack.c.l.b16 %v274
        %v417 = vunpack.c.l.b16 %v275
        %v418 = vunpack.c.l.b16 %v276
        %v419 = vunpack.c.l.b16 %v277
        %v420 = vunpack.c.l.b16 %v278
        %v421 = vpack.c.b16 %v358, %v357
        %v422 = vpack.c.b16 %v360, %v359
        %v423 = vpack.c.b16 %v362, %v361
        %v424 = vpack.c.b16 %v364, %v363
        %v425 = vpack.c.b16 %v366, %v365
        %v426 = vpack.c.b16 %v368, %v367
        %v427 = vpack.c.b16 %v370, %v369
        %v428 = vpack.c.b16 %v372, %v371
        %v429 = vpack.c.b16 %v374, %v373
        %v430 = vpack.c.b16 %v376, %v375
        %v431 = vpack.c.b16 %v378, %v377
        %v432 = vpack.c.b16 %v380, %v379
        %v433 = vpack.c.b16 %v382, %v381
        %v434 = vpack.c.b16 %v384, %v383
        %v435 = vpack.c.b16 %v386, %v385
        %v436 = vpack.c.b16 %v388, %v387
        %v437 = vpack.c.b16 %v390, %v389
        %v438 = vpack.c.b16 %v392, %v391
        %v439 = vpack.c.b16 %v394, %v393
        %v440 = vpack.c.b16 %v396, %v395
        %v441 = vpack.c.b16 %v398, %v397
        %v442 = vpack.c.b16 %v400, %v399
        %v443 = vpack.c.b16 %v402, %v401
        %v444 = vpack.c.b16 %v404, %v403
        %v445 = vpack.c.b16 %v406, %v405
        %v446 = vpack.c.b16 %v408, %v407
        %v447 = vpack.c.b16 %v410, %v409
        %v448 = vpack.c.b16 %v412, %v411
        %v449 = vpack.c.b16 %v414, %v413
        %v450 = vpack.c.b16 %v416, %v415
        %v451 = vpack.c.b16 %v418, %v417
        %v452 = vpack.c.b16 %v420, %v419
        %485 = vmatprep.subr.bf16.mxu0 0
        %486 = vmatpush1.bf16.msra.mxu0 %v421
        %487 = vmatprep.subr.bf16.mxu0 0
        %488 = vmatpush1.bf16.msra.mxu0 %v422
        %489 = vmatprep.subr.bf16.mxu0 0
        %490 = vmatpush1.bf16.msra.mxu0 %v423
        %491 = vmatprep.subr.bf16.mxu0 0
        %492 = vmatpush1.bf16.msra.mxu0 %v424
        %493 = vmatprep.subr.bf16.mxu0 0
        %494 = vmatpush1.bf16.msra.mxu0 %v425
        %495 = vmatprep.subr.bf16.mxu0 0
        %496 = vmatpush1.bf16.msra.mxu0 %v426
        %497 = vmatprep.subr.bf16.mxu0 0
        %498 = vmatpush1.bf16.msra.mxu0 %v427
        %499 = vmatprep.subr.bf16.mxu0 0
        %500 = vmatpush1.bf16.msra.mxu0 %v428
        %501 = vmatprep.subr.bf16.mxu0 0
        %502 = vmatpush1.bf16.msra.mxu0 %v429
        %503 = vmatprep.subr.bf16.mxu0 0
        %504 = vmatpush1.bf16.msra.mxu0 %v430
        %505 = vmatprep.subr.bf16.mxu0 0
        %506 = vmatpush1.bf16.msra.mxu0 %v431
        %507 = vmatprep.subr.bf16.mxu0 0
        %508 = vmatpush1.bf16.msra.mxu0 %v432
        %509 = vmatprep.subr.bf16.mxu0 0
        %510 = vmatpush1.bf16.msra.mxu0 %v433
        %511 = vmatprep.subr.bf16.mxu0 0
        %512 = vmatpush1.bf16.msra.mxu0 %v434
        %513 = vmatprep.subr.bf16.mxu0 0
        %514 = vmatpush1.bf16.msra.mxu0 %v435
        %515 = vmatprep.subr.bf16.mxu0 0
        %516 = vmatpush1.bf16.msra.mxu0 %v436
        %517 = vmatprep.mubr.bf16.mxu0 %v286
        %518 = vmatmul.mubr.bf16.gmra.mrb[0].mxu0 %v285
        %v519 = vpop.f32.mrb[0].mxu0
        %v520 = vadd.f32 0.0, %v519
        %v521 = vpop.f32.mrb[0].mxu0
        %v522 = vpop.f32.mrb[0].mxu0
        %v523 = vpop.f32.mrb[0].mxu0
        %524 = vdwg.mxu0
        %525 = vmatprep.subr.bf16.mxu0 0
        %526 = vmatpush1.bf16.msra.mxu0 %v437
        %527 = vmatprep.subr.bf16.mxu0 0
        %528 = vmatpush1.bf16.msra.mxu0 %v438
        %529 = vmatprep.subr.bf16.mxu0 0
        %530 = vmatpush1.bf16.msra.mxu0 %v439
        %531 = vmatprep.subr.bf16.mxu0 0
        %532 = vmatpush1.bf16.msra.mxu0 %v440
        %533 = vmatprep.subr.bf16.mxu0 0
        %534 = vmatpush1.bf16.msra.mxu0 %v441
        %535 = vmatprep.subr.bf16.mxu0 0
        %536 = vmatpush1.bf16.msra.mxu0 %v442
        %537 = vmatprep.subr.bf16.mxu0 0
        %538 = vmatpush1.bf16.msra.mxu0 %v443
        %539 = vmatprep.subr.bf16.mxu0 0
        %540 = vmatpush1.bf16.msra.mxu0 %v444
        %541 = vmatprep.subr.bf16.mxu0 0
        %542 = vmatpush1.bf16.msra.mxu0 %v445
        %543 = vmatprep.subr.bf16.mxu0 0
        %544 = vmatpush1.bf16.msra.mxu0 %v446
        %545 = vmatprep.subr.bf16.mxu0 0
        %546 = vmatpush1.bf16.msra.mxu0 %v447
        %547 = vmatprep.subr.bf16.mxu0 0
        %548 = vmatpush1.bf16.msra.mxu0 %v448
        %549 = vmatprep.subr.bf16.mxu0 0
        %550 = vmatpush1.bf16.msra.mxu0 %v449
        %551 = vmatprep.subr.bf16.mxu0 0
        %552 = vmatpush1.bf16.msra.mxu0 %v450
        %553 = vmatprep.subr.bf16.mxu0 0
        %554 = vmatpush1.bf16.msra.mxu0 %v451
        %555 = vmatprep.subr.bf16.mxu0 0
        %556 = vmatpush1.bf16.msra.mxu0 %v452
        %557 = vmatprep.mubr.bf16.mxu0 %v288
        %558 = vmatmul.mubr.bf16.gmra.mrb[0].mxu0 %v287
        %v559 = vpop.f32.mrb[0].mxu0
        %v560 = vadd.f32 %v520, %v559
        %v561 = vpop.f32.mrb[0].mxu0
        %v562 = vpop.f32.mrb[0].mxu0
        %v563 = vpop.f32.mrb[0].mxu0
        %564 = vdwg.mxu0
        %v565 = vadd.f32 %v212, %v560
        %vm566 = vcmask 261120
        %567 = vst.msk [vmem:[#allocation2] sm:$0xff] %vm566, %v565
        %p568 = scmp.eq.s32.totalorder %s21, 1
        // Predicated region
        $region33: #{tpu_custom_call.1} parent=27 // pred_check
          %p569 = pneg %p568
        $region34: #{tpu_custom_call.1} parent=27 // pred_check_branch
          %571 = sbr.rel (%p569) target = $region36
        $region35: #{tpu_custom_call.1} parent=27 // pred_region
          %v572 = vld [vmem:[#allocation2] sm:$0xff]
          %573 = vst.msk [vmem:[#allocation3] sm:$0xff] %vm566, %v572
        $region36: #{tpu_custom_call.1} parent=27 // pred_fallthru
          _
        // Predicated region
        $region37: #{tpu_custom_call.1} parent=27 // pred_check
          %p574 = pneg %p109
        $region38: #{tpu_custom_call.1} parent=27 // pred_check_branch
          %576 = sbr.rel (%p574) target = $region40
        $region39: #{tpu_custom_call.1} parent=27 // pred_region
          %s578 = ssub.s32 128, 128
          %579 = vsyncadd [#allocation4], %s578
          %s580 = sadd.s32 %s20, %s19
          %s581 = smul.addr %s580, 128
          %s582 = scalar_lea.hbm %s2, %s581
          %s584 = sshll.u32 [#allocation3], 4
          %s585 = int_to_ptr.vmem [resolvable:$true] %s584
          %587 = dma.vmem_to_hbm [thread:$0]  %s585, 128, %s582, [#allocation4]
        $region40: #{tpu_custom_call.1} parent=27 // pred_fallthru
          _
        // Predicated region
        $region41: #{tpu_custom_call.1} parent=27 // pred_check
          %p588 = pneg %p109
        $region42: #{tpu_custom_call.1} parent=27 // pred_check_branch
          %590 = sbr.rel (%p588) target = $region44
        $region43: #{tpu_custom_call.1} parent=27 // pred_region
          %591 = dma.done [#allocation4], 128
        $region44: #{tpu_custom_call.1} parent=27 // pred_fallthru
          _
      $region28: #{tpu_custom_call.1} parent=5 // pred_fallthru
        _
      %p592 = scmp.le.s32.totalorder 2, %s9
      // Predicated region
      $region45: #{tpu_custom_call.1} parent=5 // pred_check
        %p593 = pneg %p592
      $region46: #{tpu_custom_call.1} parent=5 // pred_check_branch
        %595 = sbr.rel (%p593) target = $region48
      $region47: #{tpu_custom_call.1} parent=5 // pred_region
        %s596 = ssub.s32 %s9, 2
      $region48: #{tpu_custom_call.1} parent=5 // pred_fallthru
        _
    $region6: #{tpu_custom_call.1} parent=1 // loop_footer
      %s13 = sadd.s32 1, %s9
    $region7: #{tpu_custom_call.1} parent=1 // loop_footer_branch
      %8 = sbr.rel target = $region3
    $region8: #{tpu_custom_call.1} parent=1 // loop_exit
      _
    %597 = vsyncpa [#allocation4], 1
    %s598 = scalar_lea.sflag [#allocation4], 1
    %599 = vsyncpa %s598, 1

</llo_original>
